<compile_context>
chip_gen: v6e
topology: v6e:2x2x1
jax: 0.10.0
libtpu: 0.0.40
codegen_flags: <defaults>
</compile_context>

<pallas_src>
import functools

import jax
import jax.numpy as jnp
from jax.experimental import pallas as pl
from jax.experimental.pallas import tpu as pltpu


def _activation_fn(name):
    if name == "relu":
        return lambda x: jnp.maximum(x, 0.0)
    elif name == "tanh":
        return jnp.tanh
    elif name == "leaky_relu":
        return lambda x: jnp.where(x > 0, x, 0.01 * x)
    else:
        raise NotImplementedError(f"Activation {name} not implemented")


def _mlp_kernel(*refs, num_linear, act_name):
    """Fused MLP over one batch tile.

    refs = (obs_ref, act_ref,
            w0_obs, w0_act, b0, w1, b1, ..., w_{L-1}, b_{L-1},
            out_ref)
    Hidden layers get the activation; the final linear head does not
    (torchrl-style MLP: `depth` hidden layers + linear head).
    """
    obs_ref, act_ref = refs[0], refs[1]
    out_ref = refs[-1]
    params = refs[2:-1]
    act = _activation_fn(act_name)

    w0_obs = params[0][...]
    w0_act = params[1][...]
    b0 = params[2][...].astype(jnp.float32)

    # First layer: split matmul replaces the obs/act concat. Operands are fed
    # in their stored dtype; the MXU accumulates in f32.
    h = (jnp.dot(obs_ref[...], w0_obs, preferred_element_type=jnp.float32)
         + jnp.dot(act_ref[...], w0_act, preferred_element_type=jnp.float32)
         + b0)
    if num_linear > 1:
        h = act(h)

    rest = params[3:]
    for i in range(num_linear - 1):
        w = rest[2 * i][...]
        b = rest[2 * i + 1][...].astype(jnp.float32)
        h = jnp.dot(h.astype(w.dtype), w, preferred_element_type=jnp.float32) + b
        if i < num_linear - 2:
            h = act(h)

    out_ref[...] = h.astype(out_ref.dtype)


def init_qvalue_params(key, obs_dim, act_dim, depth, num_cells, dtype=jnp.float32):
    """Deterministic parameter init (LeCun-uniform-ish, like torch Linear).

    Weights are (in_features, out_features); biases are (1, out_features).
    """
    in_dim = obs_dim + act_dim
    dims = [in_dim] + [num_cells] * depth + [1]
    params = []
    for i in range(len(dims) - 1):
        key, kw, kb = jax.random.split(key, 3)
        fan_in = dims[i]
        bound = 1.0 / jnp.sqrt(jnp.asarray(fan_in, dtype=jnp.float32))
        w = jax.random.uniform(kw, (dims[i], dims[i + 1]), dtype, -bound, bound)
        b = jax.random.uniform(kb, (1, dims[i + 1]), dtype, -bound, bound)
        params.append((w, b))
    return params


def qvalue_forward(obs, act, params, activation="relu", block_batch=512):
    """QValueModule.forward: Q = MLP(concat([obs, act], -1)), concat fused away."""
    batch, obs_dim = obs.shape
    act_dim = act.shape[-1]
    out_dtype = obs.dtype
    num_linear = len(params)

    # --- batch tiling / padding --------------------------------------------
    if batch <= block_batch:
        tb = batch                      # single tile == full array dim (always legal)
        padded = batch
    else:
        tb = block_batch                # multiple of 8/16 sublanes by construction
        padded = ((batch + tb - 1) // tb) * tb
        if padded != batch:
            pad = padded - batch
            obs = jnp.pad(obs, ((0, pad), (0, 0)))
            act = jnp.pad(act, ((0, pad), (0, 0)))
    grid = (padded // tb,)

    # --- flatten params; split the first layer's weight ---------------------
    (w0, b0) = params[0]
    flat_params = [w0[:obs_dim], w0[obs_dim:], b0]
    for (w, b) in params[1:]:
        flat_params.extend([w, b])

    in_specs = [
        pl.BlockSpec((tb, obs_dim), lambda i: (i, 0)),
        pl.BlockSpec((tb, act_dim), lambda i: (i, 0)),
    ]
    # Constant block index => each weight/bias is DMA'd once and stays
    # VMEM-resident across all batch-tile steps.
    for p in flat_params:
        in_specs.append(pl.BlockSpec(p.shape, lambda i: (0, 0)))

    out_specs = pl.BlockSpec((tb, 1), lambda i: (i, 0))
    out_shape = jax.ShapeDtypeStruct((padded, 1), out_dtype)

    # --- advisory cost estimate ---------------------------------------------
    itemsize = jnp.dtype(out_dtype).itemsize
    flops = 0
    transcendentals = 0
    param_bytes = 0
    for li, (w, b) in enumerate(params):
        flops += 2 * padded * w.shape[0] * w.shape[1] + padded * w.shape[1]
        param_bytes += w.size * w.dtype.itemsize + b.size * b.dtype.itemsize
        if activation == "tanh" and li < num_linear - 1:
            transcendentals += padded * w.shape[1]
    bytes_accessed = padded * (obs_dim + act_dim + 1) * itemsize + param_bytes

    kernel = functools.partial(
        _mlp_kernel, num_linear=num_linear, act_name=activation
    )

    q = pl.pallas_call(
        kernel,
        out_shape=out_shape,
        grid=grid,
        in_specs=in_specs,
        out_specs=out_specs,
        compiler_params=pltpu.CompilerParams(
            dimension_semantics=("parallel",)),
        cost_estimate=pl.CostEstimate(
            flops=flops,
            transcendentals=transcendentals,
            bytes_accessed=bytes_accessed),
    )(obs, act, *flat_params)

    if padded != batch:
        q = q[:batch]
    return q


def _reference_forward(obs, act, params, activation="relu"):
    fn = _activation_fn(activation)
    h = jnp.concatenate([obs, act], axis=-1).astype(jnp.float32)
    for i, (w, b) in enumerate(params):
        h = h @ w.astype(jnp.float32) + b.astype(jnp.float32)
        if i < len(params) - 1:
            h = fn(h)
    return h


if __name__ == "__main__":
    # Module-consistent shapes: obs_spec=12, act_spec=4,
    # net_spec = (depth=2, num_cells=32, activation='relu').
    obs_dim, act_dim = 12, 4
    depth, num_cells = 2, 32

    key = jax.random.PRNGKey(0)
    k_obs, k_act, k_params, k_obs2, k_act2 = jax.random.split(key, 5)
    params = init_qvalue_params(k_params, obs_dim, act_dim, depth, num_cells)

    # Small batch: single tile (block == full batch).
    batch = 8
    obs = jax.random.normal(k_obs, (batch, obs_dim), jnp.float32)
    act = jax.random.normal(k_act, (batch, act_dim), jnp.float32)
    q = jax.block_until_ready(qvalue_forward(obs, act, params, activation="relu"))
    q_ref = _reference_forward(obs, act, params, activation="relu")
    assert q.shape == (batch, 1)
    assert jnp.allclose(q, q_ref, atol=1e-5, rtol=1e-5)

    # Larger, non-multiple batch: exercises the batch-tiled grid + padding path.
    big_batch = 1100
    obs_b = jax.random.normal(k_obs2, (big_batch, obs_dim), jnp.float32)
    act_b = jax.random.normal(k_act2, (big_batch, act_dim), jnp.float32)
    q_b = jax.block_until_ready(
        qvalue_forward(obs_b, act_b, params, activation="relu", block_batch=512))
    q_b_ref = _reference_forward(obs_b, act_b, params, activation="relu")
    assert q_b.shape == (big_batch, 1)
    assert jnp.allclose(q_b, q_b_ref, atol=1e-4, rtol=1e-4)

    print("KERNEL_OK")
</pallas_src>

<mosaic_0001>
module attributes {stable_mosaic.version = 11 : i64} {
  func.func @_mlp_kernel(%arg0: i32, %arg1: memref<8x12xf32, #tpu.memory_space<vmem>>, %arg2: memref<8x4xf32, #tpu.memory_space<vmem>>, %arg3: memref<12x32xf32, #tpu.memory_space<vmem>>, %arg4: memref<4x32xf32, #tpu.memory_space<vmem>>, %arg5: memref<1x32xf32, #tpu.memory_space<vmem>>, %arg6: memref<32x32xf32, #tpu.memory_space<vmem>>, %arg7: memref<1x32xf32, #tpu.memory_space<vmem>>, %arg8: memref<32x1xf32, #tpu.memory_space<vmem>>, %arg9: memref<1x1xf32, #tpu.memory_space<vmem>>, %arg10: memref<8x1xf32, #tpu.memory_space<vmem>>) attributes {dimension_semantics = [#tpu.dimension_semantics<parallel>], iteration_bounds = array<i64: 1>, scalar_prefetch = 0 : i64, scratch_operands = 0 : i64, tpu.core_type = #tpu.core_type<tc>, window_params = [{transform_indices = @transform_0, window_bounds = array<i64: 8, 12>}, {transform_indices = @transform_1, window_bounds = array<i64: 8, 4>}, {pipeline_mode = #tpu.pipeline_mode<synchronous>, transform_indices = @transform_2, window_bounds = array<i64: 12, 32>}, {pipeline_mode = #tpu.pipeline_mode<synchronous>, transform_indices = @transform_3, window_bounds = array<i64: 4, 32>}, {pipeline_mode = #tpu.pipeline_mode<synchronous>, transform_indices = @transform_4, window_bounds = array<i64: 1, 32>}, {pipeline_mode = #tpu.pipeline_mode<synchronous>, transform_indices = @transform_5, window_bounds = array<i64: 32, 32>}, {pipeline_mode = #tpu.pipeline_mode<synchronous>, transform_indices = @transform_6, window_bounds = array<i64: 1, 32>}, {pipeline_mode = #tpu.pipeline_mode<synchronous>, transform_indices = @transform_7, window_bounds = array<i64: 32, 1>}, {pipeline_mode = #tpu.pipeline_mode<synchronous>, transform_indices = @transform_8, window_bounds = array<i64: 1, 1>}, {transform_indices = @transform_9, window_bounds = array<i64: 8, 1>}]} {
    %c0 = arith.constant 0 : index
    %c0_0 = arith.constant 0 : index
    %0 = vector.load %arg3[%c0, %c0_0] : memref<12x32xf32, #tpu.memory_space<vmem>>, vector<12x32xf32>
    %c0_1 = arith.constant 0 : index
    %c0_2 = arith.constant 0 : index
    %1 = vector.load %arg4[%c0_1, %c0_2] : memref<4x32xf32, #tpu.memory_space<vmem>>, vector<4x32xf32>
    %c0_3 = arith.constant 0 : index
    %c0_4 = arith.constant 0 : index
    %2 = vector.load %arg5[%c0_3, %c0_4] : memref<1x32xf32, #tpu.memory_space<vmem>>, vector<1x32xf32>
    %c0_5 = arith.constant 0 : index
    %c0_6 = arith.constant 0 : index
    %3 = vector.load %arg1[%c0_5, %c0_6] : memref<8x12xf32, #tpu.memory_space<vmem>>, vector<8x12xf32>
    %cst = arith.constant dense<0.000000e+00> : vector<8x32xf32>
    %4 = tpu.matmul %3, %0, %cst {dimension_numbers = #tpu.dot_dimension_numbers<[1], [0], [0], [1], [0, 0, 1, 1], [], []>} : vector<8x12xf32>, vector<12x32xf32>, vector<8x32xf32> -> vector<8x32xf32>
    %c0_7 = arith.constant 0 : index
    %c0_8 = arith.constant 0 : index
    %5 = vector.load %arg2[%c0_7, %c0_8] : memref<8x4xf32, #tpu.memory_space<vmem>>, vector<8x4xf32>
    %cst_9 = arith.constant dense<0.000000e+00> : vector<8x32xf32>
    %6 = tpu.matmul %5, %1, %cst_9 {dimension_numbers = #tpu.dot_dimension_numbers<[1], [0], [0], [1], [0, 0, 1, 1], [], []>} : vector<8x4xf32>, vector<4x32xf32>, vector<8x32xf32> -> vector<8x32xf32>
    %7 = arith.addf %4, %6 : vector<8x32xf32>
    %8 = vector.broadcast %2 : vector<1x32xf32> to vector<8x32xf32>
    %9 = arith.addf %7, %8 : vector<8x32xf32>
    %cst_10 = arith.constant 0.000000e+00 : f32
    %10 = vector.broadcast %cst_10 : f32 to vector<8x32xf32>
    %11 = arith.maximumf %9, %10 : vector<8x32xf32>
    %c0_11 = arith.constant 0 : index
    %c0_12 = arith.constant 0 : index
    %12 = vector.load %arg6[%c0_11, %c0_12] : memref<32x32xf32, #tpu.memory_space<vmem>>, vector<32x32xf32>
    %c0_13 = arith.constant 0 : index
    %c0_14 = arith.constant 0 : index
    %13 = vector.load %arg7[%c0_13, %c0_14] : memref<1x32xf32, #tpu.memory_space<vmem>>, vector<1x32xf32>
    %cst_15 = arith.constant dense<0.000000e+00> : vector<8x32xf32>
    %14 = tpu.matmul %11, %12, %cst_15 {dimension_numbers = #tpu.dot_dimension_numbers<[1], [0], [0], [1], [0, 0, 1, 1], [], []>} : vector<8x32xf32>, vector<32x32xf32>, vector<8x32xf32> -> vector<8x32xf32>
    %15 = vector.broadcast %13 : vector<1x32xf32> to vector<8x32xf32>
    %16 = arith.addf %14, %15 : vector<8x32xf32>
    %cst_16 = arith.constant 0.000000e+00 : f32
    %17 = vector.broadcast %cst_16 : f32 to vector<8x32xf32>
    %18 = arith.maximumf %16, %17 : vector<8x32xf32>
    %c0_17 = arith.constant 0 : index
    %c0_18 = arith.constant 0 : index
    %19 = vector.load %arg8[%c0_17, %c0_18] : memref<32x1xf32, #tpu.memory_space<vmem>>, vector<32x1xf32>
    %c0_19 = arith.constant 0 : index
    %c0_20 = arith.constant 0 : index
    %20 = vector.load %arg9[%c0_19, %c0_20] : memref<1x1xf32, #tpu.memory_space<vmem>>, vector<1x1xf32>
    %cst_21 = arith.constant dense<0.000000e+00> : vector<8x1xf32>
    %21 = tpu.matmul %18, %19, %cst_21 {dimension_numbers = #tpu.dot_dimension_numbers<[1], [0], [0], [1], [0, 0, 1, 1], [], []>} : vector<8x32xf32>, vector<32x1xf32>, vector<8x1xf32> -> vector<8x1xf32>
    %22 = vector.broadcast %20 : vector<1x1xf32> to vector<8x1xf32>
    %23 = arith.addf %21, %22 : vector<8x1xf32>
    %c0_22 = arith.constant 0 : index
    %c0_23 = arith.constant 0 : index
    %24 = vector.load %arg10[%c0_22, %c0_23] : memref<8x1xf32, #tpu.memory_space<vmem>>, vector<8x1xf32>
    tpu.vector_store %arg10[%c0_22, %c0_23], %23 {strides = array<i32>} : memref<8x1xf32, #tpu.memory_space<vmem>>, vector<8x1xf32>,
    return
  }
  func.func @transform_0(%arg0: i32) -> (i32, i32) {
    %c0_i32 = arith.constant 0 : i32
    %c0_i32_0 = arith.constant 0 : i32
    return %arg0, %c0_i32 : i32, i32
  }
  func.func @transform_1(%arg0: i32) -> (i32, i32) {
    %c0_i32 = arith.constant 0 : i32
    %c0_i32_0 = arith.constant 0 : i32
    return %arg0, %c0_i32 : i32, i32
  }
  func.func @transform_2(%arg0: i32) -> (i32, i32) {
    %c0_i32 = arith.constant 0 : i32
    %c0_i32_0 = arith.constant 0 : i32
    %c0_i32_1 = arith.constant 0 : i32
    return %c0_i32, %c0_i32_0 : i32, i32
  }
  func.func @transform_3(%arg0: i32) -> (i32, i32) {
    %c0_i32 = arith.constant 0 : i32
    %c0_i32_0 = arith.constant 0 : i32
    %c0_i32_1 = arith.constant 0 : i32
    return %c0_i32, %c0_i32_0 : i32, i32
  }
  func.func @transform_4(%arg0: i32) -> (i32, i32) {
    %c0_i32 = arith.constant 0 : i32
    %c0_i32_0 = arith.constant 0 : i32
    %c0_i32_1 = arith.constant 0 : i32
    return %c0_i32, %c0_i32_0 : i32, i32
  }
  func.func @transform_5(%arg0: i32) -> (i32, i32) {
    %c0_i32 = arith.constant 0 : i32
    %c0_i32_0 = arith.constant 0 : i32
    %c0_i32_1 = arith.constant 0 : i32
    return %c0_i32, %c0_i32_0 : i32, i32
  }
  func.func @transform_6(%arg0: i32) -> (i32, i32) {
    %c0_i32 = arith.constant 0 : i32
    %c0_i32_0 = arith.constant 0 : i32
    %c0_i32_1 = arith.constant 0 : i32
    return %c0_i32, %c0_i32_0 : i32, i32
  }
  func.func @transform_7(%arg0: i32) -> (i32, i32) {
    %c0_i32 = arith.constant 0 : i32
    %c0_i32_0 = arith.constant 0 : i32
    %c0_i32_1 = arith.constant 0 : i32
    return %c0_i32, %c0_i32_0 : i32, i32
  }
  func.func @transform_8(%arg0: i32) -> (i32, i32) {
    %c0_i32 = arith.constant 0 : i32
    %c0_i32_0 = arith.constant 0 : i32
    %c0_i32_1 = arith.constant 0 : i32
    return %c0_i32, %c0_i32_0 : i32, i32
  }
  func.func @transform_9(%arg0: i32) -> (i32, i32) {
    %c0_i32 = arith.constant 0 : i32
    %c0_i32_0 = arith.constant 0 : i32
    return %arg0, %c0_i32 : i32, i32
  }
}

</mosaic_0001>

<llo_original>
// kernel: tpu_custom_call.1
$region0: #{tpu_custom_call.1}
  #allocation0 [shape = 'u32[]', space=smem, size = 0x4, offset = 0x4, fixed_abs, tag = 'smem constant byte address 0x4 - core index']
  #allocation1 [shape = 'u32[144,128]{1,0:T(1,128)}', space=vmem, size = 0x12000, scoped, tag = 'internal scratch']
  #allocation2 [shape = 'f32[1,1]{1,0:T(1,128)S(1)}', space=vmem, size = 0x200, scoped, tag = 'scoped memory for tpu_custom_call.1']
  %s0 = inlined_call_operand.vmem [shape: f32[8,12], index: 0, kind: input, shape index: {}]
  %s1 = inlined_call_operand.vmem [shape: f32[8,4], index: 1, kind: input, shape index: {}]
  %s2 = inlined_call_operand.vmem [shape: f32[12,32], index: 2, kind: input, shape index: {}]
  %s3 = inlined_call_operand.hbm [shape: f32[4,32], index: 3, kind: input, shape index: {}]
  %s4 = inlined_call_operand.hbm [shape: f32[1,32], index: 4, kind: input, shape index: {}]
  %s5 = inlined_call_operand.vmem [shape: f32[32,32], index: 5, kind: input, shape index: {}]
  %s6 = inlined_call_operand.vmem [shape: f32[1,32], index: 6, kind: input, shape index: {}]
  %s7 = inlined_call_operand.vmem [shape: f32[32,1], index: 7, kind: input, shape index: {}]
  %s8 = inlined_call_operand.<no memory space> [shape: f32[1,1], index: 8, kind: input, shape index: {}]
  %s9 = inlined_call_operand.vmem [shape: f32[8,1], index: 9, kind: output, shape index: {}]
  %s10 = sld [smem:[#allocation0]]
  $region54: #{tpu_custom_call.1} parent=0
    _
  %s12 = ssub.s32 1, %s10
  %s13 = scalar_select 0, %s12, %s10
  %v14 = vstv %s8
  %15 = vst [vmem:[#allocation2] sm:$0x1] %v14
  $region1: #{tpu_custom_call.1} parent=0
    #allocation3 [shape = 'u8[2048]{0}', space=vmem, size = 0x800, scoped, tag = 'input window, operand 3, single buffered']
    #allocation4 [shape = 's32[1]{0}', space=sflag, size = 0x4, scoped, tag = 'scoped memory for tpu_custom_call.1']
    #allocation5 [shape = 'u8[512]{0}', space=vmem, size = 0x400, scoped, tag = 'input window, operand 4, single buffered']
    #allocation6 [shape = 's32[1]{0}', space=sflag, size = 0x4, scoped, tag = 'scoped memory for tpu_custom_call.1']
    %16 = vsyncpa [#allocation4], 0
    %17 = vsyncpa [#allocation6], 0
    // Predicated region
    $region2: #{tpu_custom_call.1} parent=1 // pred_check
      _
    $region3: #{tpu_custom_call.1} parent=1 // pred_check_branch
      %19 = sbr.rel (0) target = $region5
    $region4: #{tpu_custom_call.1} parent=1 // pred_region
      _
    $region5: #{tpu_custom_call.1} parent=1 // pred_fallthru
      _
    // Predicated region
    $region6: #{tpu_custom_call.1} parent=1 // pred_check
      _
    $region7: #{tpu_custom_call.1} parent=1 // pred_check_branch
      %21 = sbr.rel (0) target = $region9
    $region8: #{tpu_custom_call.1} parent=1 // pred_region
      _
    $region9: #{tpu_custom_call.1} parent=1 // pred_fallthru
      _
    // Predicated region
    $region10: #{tpu_custom_call.1} parent=1 // pred_check
      _
    $region11: #{tpu_custom_call.1} parent=1 // pred_check_branch
      %23 = sbr.rel (0) target = $region13
    $region12: #{tpu_custom_call.1} parent=1 // pred_region
      _
    $region13: #{tpu_custom_call.1} parent=1 // pred_fallthru
      _
    // Predicated region
    $region14: #{tpu_custom_call.1} parent=1 // pred_check
      _
    $region15: #{tpu_custom_call.1} parent=1 // pred_check_branch
      %25 = sbr.rel (0) target = $region17
    $region16: #{tpu_custom_call.1} parent=1 // pred_region
      %s27 = ssub.s32 64, 64
      %28 = vsyncadd [#allocation4], %s27
      %s30 = sshll.u32 [#allocation3], 4
      %s31 = int_to_ptr.vmem [resolvable:$true] %s30
      %33 = dma.hbm_to_vmem [thread:$0]  %s3, 64, %s31, [#allocation4]
    $region17: #{tpu_custom_call.1} parent=1 // pred_fallthru
      _
    // Predicated region
    $region18: #{tpu_custom_call.1} parent=1 // pred_check
      _
    $region19: #{tpu_custom_call.1} parent=1 // pred_check_branch
      %35 = sbr.rel (0) target = $region21
    $region20: #{tpu_custom_call.1} parent=1 // pred_region
      %s37 = ssub.s32 16, 16
      %38 = vsyncadd [#allocation6], %s37
      %s40 = sshll.u32 [#allocation5], 4
      %s41 = int_to_ptr.vmem [resolvable:$true] %s40
      %43 = dma.hbm_to_vmem [thread:$0]  %s4, 16, %s41, [#allocation6]
    $region21: #{tpu_custom_call.1} parent=1 // pred_fallthru
      _
    // Predicated region
    $region22: #{tpu_custom_call.1} parent=1 // pred_check
      _
    $region23: #{tpu_custom_call.1} parent=1 // pred_check_branch
      %45 = sbr.rel (0) target = $region25
    $region24: #{tpu_custom_call.1} parent=1 // pred_region
      _
    $region25: #{tpu_custom_call.1} parent=1 // pred_fallthru
      _
    // Predicated region
    $region26: #{tpu_custom_call.1} parent=1 // pred_check
      _
    $region27: #{tpu_custom_call.1} parent=1 // pred_check_branch
      %47 = sbr.rel (0) target = $region29
    $region28: #{tpu_custom_call.1} parent=1 // pred_region
      _
    $region29: #{tpu_custom_call.1} parent=1 // pred_fallthru
      _
    // Predicated region
    $region30: #{tpu_custom_call.1} parent=1 // pred_check
      _
    $region31: #{tpu_custom_call.1} parent=1 // pred_check_branch
      %49 = sbr.rel (0) target = $region33
    $region32: #{tpu_custom_call.1} parent=1 // pred_region
      _
    $region33: #{tpu_custom_call.1} parent=1 // pred_fallthru
      _
    // Predicated region
    $region34: #{tpu_custom_call.1} parent=1 // pred_check
      _
    $region35: #{tpu_custom_call.1} parent=1 // pred_check_branch
      %51 = sbr.rel (0) target = $region37
    $region36: #{tpu_custom_call.1} parent=1 // pred_region
      _
    $region37: #{tpu_custom_call.1} parent=1 // pred_fallthru
      _
    // Predicated region
    $region38: #{tpu_custom_call.1} parent=1 // pred_check
      _
    $region39: #{tpu_custom_call.1} parent=1 // pred_check_branch
      %53 = sbr.rel (0) target = $region41
    $region40: #{tpu_custom_call.1} parent=1 // pred_region
      %54 = dma.done [#allocation4], 64
    $region41: #{tpu_custom_call.1} parent=1 // pred_fallthru
      _
    // Predicated region
    $region42: #{tpu_custom_call.1} parent=1 // pred_check
      _
    $region43: #{tpu_custom_call.1} parent=1 // pred_check_branch
      %56 = sbr.rel (0) target = $region45
    $region44: #{tpu_custom_call.1} parent=1 // pred_region
      %57 = dma.done [#allocation6], 16
    $region45: #{tpu_custom_call.1} parent=1 // pred_fallthru
      _
    %v58 = vld [vmem:[%s2] sm:$0xff]
    %v59 = vld [vmem:[%s2 + $0x8] sm:$0xf]
    %v60 = vld [vmem:[#allocation3] sm:$0xf]
    %v61 = vld [vmem:[#allocation5] sm:$0x1]
    %v62 = vld [vmem:[%s0] sm:$0xff]
    %v63 = vld [vmem:[%s1] sm:$0xff]
    %vm64 = vcmask 31744
    %v66 = vsel %vm64, %v63, 0
    %vm68 = vcmask 1043456
    %v70 = vsel %vm68, %v60, 0
    %72 = vmatprep.subr.mxu0 0.0
    %73 = vmatpush1.msra.mxu0 0.0
    %74 = vmatprep.subr.mxu0 0.0
    %75 = vmatpush1.msra.mxu0 0.0
    %76 = vmatprep.subr.mxu0 0.0
    %77 = vmatpush1.msra.mxu0 0.0
    %78 = vmatprep.subr.mxu0 0.0
    %79 = vmatpush1.msra.mxu0 0.0
    %80 = vmatprep.subr.mxu0 0.0
    %81 = vmatpush1.msra.mxu0 0.0
    %82 = vmatprep.subr.mxu0 0.0
    %83 = vmatpush1.msra.mxu0 0.0
    %84 = vmatprep.subr.mxu0 0.0
    %85 = vmatpush1.msra.mxu0 0.0
    %86 = vmatprep.subr.mxu0 0.0
    %87 = vmatpush1.msra.mxu0 0.0
    %88 = vmatprep.subr.mxu0 0.0
    %89 = vmatpush1.msra.mxu0 0.0
    %90 = vmatprep.subr.mxu0 0.0
    %91 = vmatpush1.msra.mxu0 0.0
    %92 = vmatprep.subr.mxu0 0.0
    %93 = vmatpush1.msra.mxu0 0.0
    %94 = vmatprep.subr.mxu0 0.0
    %95 = vmatpush1.msra.mxu0 0.0
    %96 = vmatprep.subr.mxu0 0.0
    %97 = vmatpush1.msra.mxu0 0.0
    %98 = vmatprep.subr.mxu0 0.0
    %99 = vmatpush1.msra.mxu0 0.0
    %100 = vmatprep.subr.mxu0 0.0
    %101 = vmatpush1.msra.mxu0 0.0
    %102 = vmatprep.subr.mxu0 0.0
    %103 = vmatpush1.msra.mxu0 %v70
    %104 = vmatprep.subr.mxu0 0.0
    %105 = vmatpush2.msra.mxu0 0.0
    %106 = vmatprep.subr.mxu0 0.0
    %107 = vmatpush2.msra.mxu0 0.0
    %108 = vmatprep.subr.mxu0 0.0
    %109 = vmatpush2.msra.mxu0 0.0
    %110 = vmatprep.subr.mxu0 0.0
    %111 = vmatpush2.msra.mxu0 0.0
    %112 = vmatprep.subr.mxu0 0.0
    %113 = vmatpush2.msra.mxu0 0.0
    %114 = vmatprep.subr.mxu0 0.0
    %115 = vmatpush2.msra.mxu0 0.0
    %116 = vmatprep.subr.mxu0 0.0
    %117 = vmatpush2.msra.mxu0 0.0
    %118 = vmatprep.subr.mxu0 0.0
    %119 = vmatpush2.msra.mxu0 0.0
    %120 = vmatprep.subr.mxu0 0.0
    %121 = vmatpush2.msra.mxu0 0.0
    %122 = vmatprep.subr.mxu0 0.0
    %123 = vmatpush2.msra.mxu0 0.0
    %124 = vmatprep.subr.mxu0 0.0
    %125 = vmatpush2.msra.mxu0 0.0
    %126 = vmatprep.subr.mxu0 0.0
    %127 = vmatpush2.msra.mxu0 0.0
    %128 = vmatprep.subr.mxu0 0.0
    %129 = vmatpush2.msra.mxu0 0.0
    %130 = vmatprep.subr.mxu0 0.0
    %131 = vmatpush2.msra.mxu0 0.0
    %132 = vmatprep.subr.mxu0 0.0
    %133 = vmatpush2.msra.mxu0 0.0
    %134 = vmatprep.subr.mxu0 0.0
    %135 = vmatpush2.msra.mxu0 0.0
    %136 = vmatprep.mubr.f32.mxu0 0.0
    %137 = vmatmul.mubr.f32.gmra.mxu0 %v66
    %v138 = vpop.f32.mrf.mxu0
    %v139 = vadd.f32 0.0, %v138
    %v140 = vpop.f32.mrf.mxu0
    %141 = vdwg.mxu0
    %vm142 = vcmask 97280
    %v144 = vsel %vm142, %v62, 0
    %v147 = vsel %vm68, %v59, 0
    %149 = vmatprep.subr.mxu0 0.0
    %150 = vmatpush1.msra.mxu0 0.0
    %151 = vmatprep.subr.mxu0 0.0
    %152 = vmatpush1.msra.mxu0 0.0
    %153 = vmatprep.subr.mxu0 0.0
    %154 = vmatpush1.msra.mxu0 0.0
    %155 = vmatprep.subr.mxu0 0.0
    %156 = vmatpush1.msra.mxu0 0.0
    %157 = vmatprep.subr.mxu0 0.0
    %158 = vmatpush1.msra.mxu0 0.0
    %159 = vmatprep.subr.mxu0 0.0
    %160 = vmatpush1.msra.mxu0 0.0
    %161 = vmatprep.subr.mxu0 0.0
    %162 = vmatpush1.msra.mxu0 0.0
    %163 = vmatprep.subr.mxu0 0.0
    %164 = vmatpush1.msra.mxu0 0.0
    %165 = vmatprep.subr.mxu0 0.0
    %166 = vmatpush1.msra.mxu0 0.0
    %167 = vmatprep.subr.mxu0 0.0
    %168 = vmatpush1.msra.mxu0 0.0
    %169 = vmatprep.subr.mxu0 0.0
    %170 = vmatpush1.msra.mxu0 0.0
    %171 = vmatprep.subr.mxu0 0.0
    %172 = vmatpush1.msra.mxu0 0.0
    %173 = vmatprep.subr.mxu0 0.0
    %174 = vmatpush1.msra.mxu0 0.0
    %175 = vmatprep.subr.mxu0 0.0
    %176 = vmatpush1.msra.mxu0 0.0
    %177 = vmatprep.subr.mxu0 0.0
    %178 = vmatpush1.msra.mxu0 %v147
    %179 = vmatprep.subr.mxu0 0.0
    %180 = vmatpush1.msra.mxu0 %v58
    %181 = vmatprep.subr.mxu0 0.0
    %182 = vmatpush2.msra.mxu0 0.0
    %183 = vmatprep.subr.mxu0 0.0
    %184 = vmatpush2.msra.mxu0 0.0
    %185 = vmatprep.subr.mxu0 0.0
    %186 = vmatpush2.msra.mxu0 0.0
    %187 = vmatprep.subr.mxu0 0.0
    %188 = vmatpush2.msra.mxu0 0.0
    %189 = vmatprep.subr.mxu0 0.0
    %190 = vmatpush2.msra.mxu0 0.0
    %191 = vmatprep.subr.mxu0 0.0
    %192 = vmatpush2.msra.mxu0 0.0
    %193 = vmatprep.subr.mxu0 0.0
    %194 = vmatpush2.msra.mxu0 0.0
    %195 = vmatprep.subr.mxu0 0.0
    %196 = vmatpush2.msra.mxu0 0.0
    %197 = vmatprep.subr.mxu0 0.0
    %198 = vmatpush2.msra.mxu0 0.0
    %199 = vmatprep.subr.mxu0 0.0
    %200 = vmatpush2.msra.mxu0 0.0
    %201 = vmatprep.subr.mxu0 0.0
    %202 = vmatpush2.msra.mxu0 0.0
    %203 = vmatprep.subr.mxu0 0.0
    %204 = vmatpush2.msra.mxu0 0.0
    %205 = vmatprep.subr.mxu0 0.0
    %206 = vmatpush2.msra.mxu0 0.0
    %207 = vmatprep.subr.mxu0 0.0
    %208 = vmatpush2.msra.mxu0 0.0
    %209 = vmatprep.subr.mxu0 0.0
    %210 = vmatpush2.msra.mxu0 0.0
    %211 = vmatprep.subr.mxu0 0.0
    %212 = vmatpush2.msra.mxu0 0.0
    %213 = vmatprep.mubr.f32.mxu0 0.0
    %214 = vmatmul.mubr.f32.gmra.mxu0 %v144
    %v215 = vpop.f32.mrf.mxu0
    %v216 = vadd.f32 %v139, %v215
    %v217 = vpop.f32.mrf.mxu0
    %218 = vdwg.mxu0
    %v220 = vlaneseq
    %v221 = vshrl.u32 %v220, 7
    %v222 = vsub.s32 0, %v221
    %v223 = vrot.slane %v61, %v222
    %v225 = vadd.f32 %v216, %v223
    %v226 = vmax.f32 %v225, 0.0
    %v227 = vld [vmem:[%s5] sm:$0xff]
    %v228 = vld [vmem:[%s5 + $0x8] sm:$0xff]
    %v229 = vld [vmem:[%s5 + $0x10] sm:$0xff]
    %v230 = vld [vmem:[%s5 + $0x18] sm:$0xff]
    %v231 = vld [vmem:[%s6] sm:$0x1]
    %v233 = vlaneseq
    %v234 = vshrl.u32 %v233, 7
    %v235 = vsub.s32 0, %v234
    %v236 = vrot.slane %v231, %v235
    %vm238 = vcmask 261120
    %v240 = vsel %vm238, %v226, 0
    %242 = vmatprep.subr.mxu0 0.0
    %243 = vmatpush1.msra.mxu0 0.0
    %244 = vmatprep.subr.mxu0 0.0
    %245 = vmatpush1.msra.mxu0 0.0
    %246 = vmatprep.subr.mxu0 0.0
    %247 = vmatpush1.msra.mxu0 0.0
    %248 = vmatprep.subr.mxu0 0.0
    %249 = vmatpush1.msra.mxu0 0.0
    %250 = vmatprep.subr.mxu0 0.0
    %251 = vmatpush1.msra.mxu0 0.0
    %252 = vmatprep.subr.mxu0 0.0
    %253 = vmatpush1.msra.mxu0 0.0
    %254 = vmatprep.subr.mxu0 0.0
    %255 = vmatpush1.msra.mxu0 0.0
    %256 = vmatprep.subr.mxu0 0.0
    %257 = vmatpush1.msra.mxu0 0.0
    %258 = vmatprep.subr.mxu0 0.0
    %259 = vmatpush1.msra.mxu0 0.0
    %260 = vmatprep.subr.mxu0 0.0
    %261 = vmatpush1.msra.mxu0 0.0
    %262 = vmatprep.subr.mxu0 0.0
    %263 = vmatpush1.msra.mxu0 0.0
    %264 = vmatprep.subr.mxu0 0.0
    %265 = vmatpush1.msra.mxu0 0.0
    %266 = vmatprep.subr.mxu0 0.0
    %267 = vmatpush1.msra.mxu0 %v230
    %268 = vmatprep.subr.mxu0 0.0
    %269 = vmatpush1.msra.mxu0 %v229
    %270 = vmatprep.subr.mxu0 0.0
    %271 = vmatpush1.msra.mxu0 %v228
    %272 = vmatprep.subr.mxu0 0.0
    %273 = vmatpush1.msra.mxu0 %v227
    %274 = vmatprep.subr.mxu0 0.0
    %275 = vmatpush2.msra.mxu0 0.0
    %276 = vmatprep.subr.mxu0 0.0
    %277 = vmatpush2.msra.mxu0 0.0
    %278 = vmatprep.subr.mxu0 0.0
    %279 = vmatpush2.msra.mxu0 0.0
    %280 = vmatprep.subr.mxu0 0.0
    %281 = vmatpush2.msra.mxu0 0.0
    %282 = vmatprep.subr.mxu0 0.0
    %283 = vmatpush2.msra.mxu0 0.0
    %284 = vmatprep.subr.mxu0 0.0
    %285 = vmatpush2.msra.mxu0 0.0
    %286 = vmatprep.subr.mxu0 0.0
    %287 = vmatpush2.msra.mxu0 0.0
    %288 = vmatprep.subr.mxu0 0.0
    %289 = vmatpush2.msra.mxu0 0.0
    %290 = vmatprep.subr.mxu0 0.0
    %291 = vmatpush2.msra.mxu0 0.0
    %292 = vmatprep.subr.mxu0 0.0
    %293 = vmatpush2.msra.mxu0 0.0
    %294 = vmatprep.subr.mxu0 0.0
    %295 = vmatpush2.msra.mxu0 0.0
    %296 = vmatprep.subr.mxu0 0.0
    %297 = vmatpush2.msra.mxu0 0.0
    %298 = vmatprep.subr.mxu0 0.0
    %299 = vmatpush2.msra.mxu0 0.0
    %300 = vmatprep.subr.mxu0 0.0
    %301 = vmatpush2.msra.mxu0 0.0
    %302 = vmatprep.subr.mxu0 0.0
    %303 = vmatpush2.msra.mxu0 0.0
    %304 = vmatprep.subr.mxu0 0.0
    %305 = vmatpush2.msra.mxu0 0.0
    %306 = vmatprep.mubr.f32.mxu0 0.0
    %307 = vmatmul.mubr.f32.gmra.mxu0 %v240
    %v308 = vpop.f32.mrf.mxu0
    %v309 = vadd.f32 %v236, %v308
    %v310 = vpop.f32.mrf.mxu0
    %311 = vdwg.mxu0
    %v312 = vmax.f32 %v309, 0.0
    %v313 = vld [vmem:[%s7] sm:$0xff]
    %v314 = vld [vmem:[%s7 + $0x8] sm:$0xff]
    %v315 = vld [vmem:[%s7 + $0x10] sm:$0xff]
    %v316 = vld [vmem:[%s7 + $0x18] sm:$0xff]
    %v317 = vld [vmem:[#allocation2] sm:$0x1]
    %v319 = vlaneseq
    %v320 = vshrl.u32 %v319, 7
    %v321 = vsub.s32 0, %v320
    %v322 = vrot.slane %v317, %v321
    %v325 = vsel %vm238, %v312, 0
    %327 = vmatprep.subr.mxu0 0.0
    %328 = vmatpush1.msra.mxu0 0.0
    %329 = vmatprep.subr.mxu0 0.0
    %330 = vmatpush1.msra.mxu0 0.0
    %331 = vmatprep.subr.mxu0 0.0
    %332 = vmatpush1.msra.mxu0 0.0
    %333 = vmatprep.subr.mxu0 0.0
    %334 = vmatpush1.msra.mxu0 0.0
    %335 = vmatprep.subr.mxu0 0.0
    %336 = vmatpush1.msra.mxu0 0.0
    %337 = vmatprep.subr.mxu0 0.0
    %338 = vmatpush1.msra.mxu0 0.0
    %339 = vmatprep.subr.mxu0 0.0
    %340 = vmatpush1.msra.mxu0 0.0
    %341 = vmatprep.subr.mxu0 0.0
    %342 = vmatpush1.msra.mxu0 0.0
    %343 = vmatprep.subr.mxu0 0.0
    %344 = vmatpush1.msra.mxu0 0.0
    %345 = vmatprep.subr.mxu0 0.0
    %346 = vmatpush1.msra.mxu0 0.0
    %347 = vmatprep.subr.mxu0 0.0
    %348 = vmatpush1.msra.mxu0 0.0
    %349 = vmatprep.subr.mxu0 0.0
    %350 = vmatpush1.msra.mxu0 0.0
    %351 = vmatprep.subr.mxu0 0.0
    %352 = vmatpush1.msra.mxu0 %v316
    %353 = vmatprep.subr.mxu0 0.0
    %354 = vmatpush1.msra.mxu0 %v315
    %355 = vmatprep.subr.mxu0 0.0
    %356 = vmatpush1.msra.mxu0 %v314
    %357 = vmatprep.subr.mxu0 0.0
    %358 = vmatpush1.msra.mxu0 %v313
    %359 = vmatprep.subr.mxu0 0.0
    %360 = vmatpush2.msra.mxu0 0.0
    %361 = vmatprep.subr.mxu0 0.0
    %362 = vmatpush2.msra.mxu0 0.0
    %363 = vmatprep.subr.mxu0 0.0
    %364 = vmatpush2.msra.mxu0 0.0
    %365 = vmatprep.subr.mxu0 0.0
    %366 = vmatpush2.msra.mxu0 0.0
    %367 = vmatprep.subr.mxu0 0.0
    %368 = vmatpush2.msra.mxu0 0.0
    %369 = vmatprep.subr.mxu0 0.0
    %370 = vmatpush2.msra.mxu0 0.0
    %371 = vmatprep.subr.mxu0 0.0
    %372 = vmatpush2.msra.mxu0 0.0
    %373 = vmatprep.subr.mxu0 0.0
    %374 = vmatpush2.msra.mxu0 0.0
    %375 = vmatprep.subr.mxu0 0.0
    %376 = vmatpush2.msra.mxu0 0.0
    %377 = vmatprep.subr.mxu0 0.0
    %378 = vmatpush2.msra.mxu0 0.0
    %379 = vmatprep.subr.mxu0 0.0
    %380 = vmatpush2.msra.mxu0 0.0
    %381 = vmatprep.subr.mxu0 0.0
    %382 = vmatpush2.msra.mxu0 0.0
    %383 = vmatprep.subr.mxu0 0.0
    %384 = vmatpush2.msra.mxu0 0.0
    %385 = vmatprep.subr.mxu0 0.0
    %386 = vmatpush2.msra.mxu0 0.0
    %387 = vmatprep.subr.mxu0 0.0
    %388 = vmatpush2.msra.mxu0 0.0
    %389 = vmatprep.subr.mxu0 0.0
    %390 = vmatpush2.msra.mxu0 0.0
    %391 = vmatprep.mubr.f32.mxu0 0.0
    %392 = vmatmul.mubr.f32.gmra.mxu0 %v325
    %v393 = vpop.f32.mrf.mxu0
    %v394 = vadd.f32 %v322, %v393
    %v395 = vpop.f32.mrf.mxu0
    %396 = vdwg.mxu0
    %vm397 = vcmask 7168
    %398 = vst.msk [vmem:[%s9] sm:$0xff] %vm397, %v394
    // Predicated region
    $region46: #{tpu_custom_call.1} parent=1 // pred_check
      _
    $region47: #{tpu_custom_call.1} parent=1 // pred_check_branch
      %400 = sbr.rel (0) target = $region49
    $region48: #{tpu_custom_call.1} parent=1 // pred_region
      _
    $region49: #{tpu_custom_call.1} parent=1 // pred_fallthru
      _
    // Predicated region
    $region50: #{tpu_custom_call.1} parent=1 // pred_check
      _
    $region51: #{tpu_custom_call.1} parent=1 // pred_check_branch
      %402 = sbr.rel (0) target = $region53
    $region52: #{tpu_custom_call.1} parent=1 // pred_region
      _
    $region53: #{tpu_custom_call.1} parent=1 // pred_fallthru
      _
    %403 = vsyncpa [#allocation4], 1
    %404 = vsyncpa [#allocation6], 1

</llo_original>
